<compile_context>
chip_gen: v7x
topology: tpu7x:2x2x1
jax: 0.10.0
libtpu: 0.0.40
codegen_flags: <defaults>
</compile_context>

<pallas_src>
import functools
import math

import jax
import jax.numpy as jnp
from jax.experimental import pallas as pl
from jax.experimental.pallas import tpu as pltpu


_VMEM_BUDGET = 40 * 1024 * 1024   # conservative vs. v7x's 64 MiB physical VMEM
_VMEM_LIMIT = 48 * 1024 * 1024


def _round_up(v, m):
    return ((v + m - 1) // m) * m


def _two_linear_kernel(x_ref, w1t_ref, w2t_ref, o_ref, *, act):
    # x_ref:   (TN, IN)        block of rows
    # w1t_ref: (IN, MID_P)     full weight 1, transposed + lane-padded
    # w2t_ref: (MID_P, OUT_P)  full weight 2, transposed + lane-padded
    # o_ref:   (TN, OUT_P)     lane-dense output block
    x = x_ref[...]
    h = jnp.dot(x, w1t_ref[...], preferred_element_type=jnp.float32)
    if act:
        h = h * jax.nn.sigmoid(h)          # swish, kept in f32 (EUP path)
    # Any downcast (bf16 operands) happens only AFTER the activation.
    y = jnp.dot(h.astype(w2t_ref.dtype), w2t_ref[...],
                preferred_element_type=jnp.float32)
    if act:
        y = y * jax.nn.sigmoid(y)          # swish
    o_ref[...] = y.astype(o_ref.dtype)


def prepare_two_linear_weights(w1, w2, compute_dtype=None):
    """One-time (hoisted) weight prep: transpose + pad lanes to 128.

    w1: (middle, in), w2: (out, middle) -> w1t: (in, mid_p), w2t: (mid_p, out_p).
    Zero padding is exact through both matmuls and through swish (swish(0)=0).
    """
    mid_ch, in_ch = w1.shape
    out_ch, mid_ch2 = w2.shape
    assert mid_ch2 == mid_ch
    mid_p = _round_up(mid_ch, 128)
    out_p = _round_up(out_ch, 128)
    w1t = jnp.zeros((in_ch, mid_p), w1.dtype).at[:, :mid_ch].set(w1.T)
    w2t = jnp.zeros((mid_p, out_p), w2.dtype).at[:mid_ch, :out_ch].set(w2.T)
    if compute_dtype is not None:
        w1t = w1t.astype(compute_dtype)
        w2t = w2t.astype(compute_dtype)
    return w1t, w2t


def two_linear_prepared(x, w1t, w2t, *, out_ch=None, act=False, tile_n=512,
                        compute_dtype=None):
    """x: (N, in); w1t/w2t from prepare_two_linear_weights(). Returns (N, out_ch)."""
    n, in_ch = x.shape
    in_ch_w, mid_p = w1t.shape
    mid_p2, out_p = w2t.shape
    assert in_ch_w == in_ch and mid_p2 == mid_p
    if out_ch is None:
        out_ch = out_p
    out_dtype = x.dtype

    x_c = x if compute_dtype is None else x.astype(compute_dtype)
    x_item = jnp.dtype(x_c.dtype).itemsize
    w_item = jnp.dtype(w1t.dtype).itemsize
    o_item = jnp.dtype(out_dtype).itemsize

    # Row-tile alignment: sublane packing is 8 (f32) / 16 (bf16) / 32 (int8).
    row_align = {4: 8, 2: 16, 1: 32}.get(x_item, 8)
    tn = max(row_align, min(_round_up(tile_n, row_align),
                            _round_up(n, row_align)))

    # Explicit VMEM budget: double-buffered x/out, (worst case double-buffered)
    # resident weights, plus the f32 intermediate h staged through VMEM.
    def vmem_estimate(t):
        return (2 * t * in_ch * x_item
                + 2 * (in_ch * mid_p + mid_p * out_p) * w_item
                + 2 * t * out_p * o_item
                + t * mid_p * 4)
    while tn > row_align and vmem_estimate(tn) > _VMEM_BUDGET:
        tn = max(row_align, _round_up(tn // 2, row_align))
    # TODO(synk): for very large channel counts (weights alone over budget) add
    # OUT/MID grid axes with a VMEM f32 accumulator instead of full-weight
    # residency.

    grid = (pl.cdiv(n, tn),)   # >= 2 blocks for large N -> megacore split on v7x

    cost = pl.CostEstimate(
        flops=2 * n * (in_ch * mid_p + mid_p * out_p),
        transcendentals=(n * (mid_p + out_p)) if act else 0,
        bytes_accessed=(n * in_ch * x_item
                        + (in_ch * mid_p + mid_p * out_p) * w_item
                        + n * out_p * o_item),
    )

    kernel = functools.partial(_two_linear_kernel, act=act)

    def build(single_buffer_weights):
        # Weight block index is constant across the grid: single-buffer them to
        # halve their VMEM footprint (key headroom on v7x).
        w_kwargs = ({'pipeline_mode': pl.Buffered(1)}
                    if single_buffer_weights else {})
        return pl.pallas_call(
            kernel,
            out_shape=jax.ShapeDtypeStruct((n, out_p), out_dtype),
            grid_spec=pltpu.PrefetchScalarGridSpec(
                num_scalar_prefetch=0,
                grid=grid,
                in_specs=[
                    pl.BlockSpec((tn, in_ch), lambda i: (i, 0)),
                    pl.BlockSpec((in_ch, mid_p), lambda i: (0, 0), **w_kwargs),
                    pl.BlockSpec((mid_p, out_p), lambda i: (0, 0), **w_kwargs),
                ],
                out_specs=pl.BlockSpec((tn, out_p), lambda i: (i, 0)),
            ),
            compiler_params=pltpu.CompilerParams(
                dimension_semantics=("parallel",),
                vmem_limit_bytes=_VMEM_LIMIT),
            cost_estimate=cost,
        )

    try:
        out = build(True)(x_c, w1t, w2t)
    except Exception:
        # pipeline_mode / Buffered(1) not supported by this JAX build:
        # fall back to default (double-buffered) weight specs.
        out = build(False)(x_c, w1t, w2t)

    return out if out_p == out_ch else out[:, :out_ch]


def two_linear(x, w1, w2, *, act=False, tile_n=512, compute_dtype=None):
    """Convenience wrapper matching TwoLinear.forward.

    For repeated calls, hoist prepare_two_linear_weights() out of the hot path
    and call two_linear_prepared() directly.
    """
    w1t, w2t = prepare_two_linear_weights(w1, w2, compute_dtype)
    return two_linear_prepared(x, w1t, w2t, out_ch=w2.shape[0], act=act,
                               tile_n=tile_n, compute_dtype=compute_dtype)


def glorot(key, shape):
    """PyG-style glorot: uniform(-a, a), a = sqrt(6 / (fan_in + fan_out))."""
    fan_out, fan_in = shape
    a = math.sqrt(6.0 / (fan_in + fan_out))
    return jax.random.uniform(key, shape, jnp.float32, minval=-a, maxval=a)


def two_linear_ref(x, w1, w2, act=False, compute_dtype=None):
    """Pure-JAX reference (mirrors the kernel's mixed-precision choices)."""
    if compute_dtype is not None:
        x = x.astype(compute_dtype)
        w1 = w1.astype(compute_dtype)
        w2 = w2.astype(compute_dtype)
    h = jnp.dot(x, w1.T, preferred_element_type=jnp.float32)
    if act:
        h = h * jax.nn.sigmoid(h)
    if compute_dtype is not None:
        h = h.astype(compute_dtype)
    y = jnp.dot(h, w2.T, preferred_element_type=jnp.float32)
    if act:
        y = y * jax.nn.sigmoid(y)
    return y


if __name__ == "__main__":
    # Small shapes consistent with the module: N=8 "nodes", in=16, mid=32, out=8.
    N, IN, MID, OUT = 8, 16, 32, 8
    key = jax.random.PRNGKey(0)
    kx, k1, k2, kx2 = jax.random.split(key, 4)

    x = jax.random.normal(kx, (N, IN), jnp.float32)
    w1 = glorot(k1, (MID, IN))   # lin1.weight: (middle, in)
    w2 = glorot(k2, (OUT, MID))  # lin2.weight: (out, middle)

    # One-time hoisted weight transpose + lane padding, reused across calls.
    w1t, w2t = prepare_two_linear_weights(w1, w2)

    # f32 path: module default (act=False) and the swish path (act=True).
    for act in (False, True):
        out = two_linear_prepared(x, w1t, w2t, out_ch=OUT, act=act)
        out = jax.block_until_ready(out)
        ref = two_linear_ref(x, w1, w2, act=act)
        assert out.shape == (N, OUT)
        assert jnp.allclose(out, ref, atol=1e-4, rtol=1e-4), f"f32 mismatch act={act}"

    # Larger, non-tile-multiple N exercising the masked tail block, plus the
    # bf16-operand path (f32 accumulation, swish in f32).
    N2 = 1000
    x2 = jax.random.normal(kx2, (N2, IN), jnp.float32)
    w1t_b, w2t_b = prepare_two_linear_weights(w1, w2, compute_dtype=jnp.bfloat16)
    out2 = two_linear_prepared(x2, w1t_b, w2t_b, out_ch=OUT, act=True,
                               compute_dtype=jnp.bfloat16)
    out2 = jax.block_until_ready(out2)
    ref2 = two_linear_ref(x2, w1, w2, act=True, compute_dtype=jnp.bfloat16)
    assert out2.shape == (N2, OUT)
    assert jnp.allclose(out2, ref2.astype(out2.dtype), atol=2e-2, rtol=2e-2), \
        "bf16 mismatch"

    print("KERNEL_OK")
</pallas_src>

<mosaic_0001>
module attributes {stable_mosaic.version = 11 : i64} {
  func.func @_two_linear_kernel(%arg0: i32, %arg1: memref<8x16xf32, #tpu.memory_space<vmem>>, %arg2: memref<16x128xf32, #tpu.memory_space<vmem>>, %arg3: memref<128x128xf32, #tpu.memory_space<vmem>>, %arg4: memref<8x128xf32, #tpu.memory_space<vmem>>) attributes {dimension_semantics = [#tpu.dimension_semantics<parallel>], iteration_bounds = array<i64: 1>, scalar_prefetch = 0 : i64, scratch_operands = 0 : i64, tpu.core_type = #tpu.core_type<tc>, window_params = [{transform_indices = @transform_0, window_bounds = array<i64: 8, 16>}, {pipeline_mode = #tpu.pipeline_mode<synchronous>, transform_indices = @transform_1, window_bounds = array<i64: 16, 128>}, {pipeline_mode = #tpu.pipeline_mode<synchronous>, transform_indices = @transform_2, window_bounds = array<i64: 128, 128>}, {transform_indices = @transform_3, window_bounds = array<i64: 8, 128>}]} {
    %c0 = arith.constant 0 : index
    %c0_0 = arith.constant 0 : index
    %0 = vector.load %arg1[%c0, %c0_0] : memref<8x16xf32, #tpu.memory_space<vmem>>, vector<8x16xf32>
    %c0_1 = arith.constant 0 : index
    %c0_2 = arith.constant 0 : index
    %1 = vector.load %arg2[%c0_1, %c0_2] : memref<16x128xf32, #tpu.memory_space<vmem>>, vector<16x128xf32>
    %cst = arith.constant dense<0.000000e+00> : vector<8x128xf32>
    %2 = tpu.matmul %0, %1, %cst {dimension_numbers = #tpu.dot_dimension_numbers<[1], [0], [0], [1], [0, 0, 1, 1], [], []>} : vector<8x16xf32>, vector<16x128xf32>, vector<8x128xf32> -> vector<8x128xf32>
    %c0_3 = arith.constant 0 : index
    %c0_4 = arith.constant 0 : index
    %3 = vector.load %arg3[%c0_3, %c0_4] : memref<128x128xf32, #tpu.memory_space<vmem>>, vector<128x128xf32>
    %cst_5 = arith.constant dense<0.000000e+00> : vector<8x128xf32>
    %4 = tpu.matmul %2, %3, %cst_5 {dimension_numbers = #tpu.dot_dimension_numbers<[1], [0], [0], [1], [0, 0, 1, 1], [], []>} : vector<8x128xf32>, vector<128x128xf32>, vector<8x128xf32> -> vector<8x128xf32>
    %c0_6 = arith.constant 0 : index
    %c0_7 = arith.constant 0 : index
    %5 = vector.load %arg4[%c0_6, %c0_7] : memref<8x128xf32, #tpu.memory_space<vmem>>, vector<8x128xf32>
    tpu.vector_store %arg4[%c0_6, %c0_7], %4 {strides = array<i32>} : memref<8x128xf32, #tpu.memory_space<vmem>>, vector<8x128xf32>,
    return
  }
  func.func @transform_0(%arg0: i32) -> (i32, i32) {
    %c0_i32 = arith.constant 0 : i32
    %c0_i32_0 = arith.constant 0 : i32
    return %arg0, %c0_i32 : i32, i32
  }
  func.func @transform_1(%arg0: i32) -> (i32, i32) {
    %c0_i32 = arith.constant 0 : i32
    %c0_i32_0 = arith.constant 0 : i32
    %c0_i32_1 = arith.constant 0 : i32
    return %c0_i32, %c0_i32_0 : i32, i32
  }
  func.func @transform_2(%arg0: i32) -> (i32, i32) {
    %c0_i32 = arith.constant 0 : i32
    %c0_i32_0 = arith.constant 0 : i32
    %c0_i32_1 = arith.constant 0 : i32
    return %c0_i32, %c0_i32_0 : i32, i32
  }
  func.func @transform_3(%arg0: i32) -> (i32, i32) {
    %c0_i32 = arith.constant 0 : i32
    %c0_i32_0 = arith.constant 0 : i32
    return %arg0, %c0_i32 : i32, i32
  }
}

module attributes {stable_mosaic.version = 11 : i64} {
  func.func @_two_linear_kernel(%arg0: i32, %arg1: memref<8x16xf32, #tpu.memory_space<vmem>>, %arg2: memref<16x128xf32, #tpu.memory_space<vmem>>, %arg3: memref<128x128xf32, #tpu.memory_space<vmem>>, %arg4: memref<8x128xf32, #tpu.memory_space<vmem>>) attributes {dimension_semantics = [#tpu.dimension_semantics<parallel>], iteration_bounds = array<i64: 1>, scalar_prefetch = 0 : i64, scratch_operands = 0 : i64, tpu.core_type = #tpu.core_type<tc>, window_params = [{transform_indices = @transform_0, window_bounds = array<i64: 8, 16>}, {pipeline_mode = #tpu.pipeline_mode<synchronous>, transform_indices = @transform_1, window_bounds = array<i64: 16, 128>}, {pipeline_mode = #tpu.pipeline_mode<synchronous>, transform_indices = @transform_2, window_bounds = array<i64: 128, 128>}, {transform_indices = @transform_3, window_bounds = array<i64: 8, 128>}]} {
    %c0 = arith.constant 0 : index
    %c0_0 = arith.constant 0 : index
    %0 = vector.load %arg1[%c0, %c0_0] : memref<8x16xf32, #tpu.memory_space<vmem>>, vector<8x16xf32>
    %c0_1 = arith.constant 0 : index
    %c0_2 = arith.constant 0 : index
    %1 = vector.load %arg2[%c0_1, %c0_2] : memref<16x128xf32, #tpu.memory_space<vmem>>, vector<16x128xf32>
    %cst = arith.constant dense<0.000000e+00> : vector<8x128xf32>
    %2 = tpu.matmul %0, %1, %cst {dimension_numbers = #tpu.dot_dimension_numbers<[1], [0], [0], [1], [0, 0, 1, 1], [], []>} : vector<8x16xf32>, vector<16x128xf32>, vector<8x128xf32> -> vector<8x128xf32>
    %c0_3 = arith.constant 0 : index
    %c0_4 = arith.constant 0 : index
    %3 = vector.load %arg3[%c0_3, %c0_4] : memref<128x128xf32, #tpu.memory_space<vmem>>, vector<128x128xf32>
    %cst_5 = arith.constant dense<0.000000e+00> : vector<8x128xf32>
    %4 = tpu.matmul %2, %3, %cst_5 {dimension_numbers = #tpu.dot_dimension_numbers<[1], [0], [0], [1], [0, 0, 1, 1], [], []>} : vector<8x128xf32>, vector<128x128xf32>, vector<8x128xf32> -> vector<8x128xf32>
    %c0_6 = arith.constant 0 : index
    %c0_7 = arith.constant 0 : index
    %5 = vector.load %arg4[%c0_6, %c0_7] : memref<8x128xf32, #tpu.memory_space<vmem>>, vector<8x128xf32>
    tpu.vector_store %arg4[%c0_6, %c0_7], %4 {strides = array<i32>} : memref<8x128xf32, #tpu.memory_space<vmem>>, vector<8x128xf32>,
    return
  }
  func.func @transform_0(%arg0: i32) -> (i32, i32) {
    %c0_i32 = arith.constant 0 : i32
    %c0_i32_0 = arith.constant 0 : i32
    return %arg0, %c0_i32 : i32, i32
  }
  func.func @transform_1(%arg0: i32) -> (i32, i32) {
    %c0_i32 = arith.constant 0 : i32
    %c0_i32_0 = arith.constant 0 : i32
    %c0_i32_1 = arith.constant 0 : i32
    return %c0_i32, %c0_i32_0 : i32, i32
  }
  func.func @transform_2(%arg0: i32) -> (i32, i32) {
    %c0_i32 = arith.constant 0 : i32
    %c0_i32_0 = arith.constant 0 : i32
    %c0_i32_1 = arith.constant 0 : i32
    return %c0_i32, %c0_i32_0 : i32, i32
  }
  func.func @transform_3(%arg0: i32) -> (i32, i32) {
    %c0_i32 = arith.constant 0 : i32
    %c0_i32_0 = arith.constant 0 : i32
    return %arg0, %c0_i32 : i32, i32
  }
}

</mosaic_0001>

<llo_original>
// kernel: tpu_custom_call.1
$region0: #{tpu_custom_call.1}
  #allocation0 [shape = 'u32[]', space=smem, size = 0x4, offset = 0x4, fixed_abs, tag = 'smem constant byte address 0x4 - core index']
  #allocation1 [shape = 'u32[144,128]{1,0:T(1,128)}', space=vmem, size = 0x12000, scoped, tag = 'internal scratch']
  %s0 = inlined_call_operand.hbm [shape: f32[8,16], index: 0, kind: input, shape index: {}]
  %s1 = inlined_call_operand.hbm [shape: f32[16,128], index: 1, kind: input, shape index: {}]
  %s2 = inlined_call_operand.hbm [shape: f32[128,128], index: 2, kind: input, shape index: {}]
  %s3 = inlined_call_operand.hbm [shape: f32[8,128], index: 3, kind: output, shape index: {}]
  %s4 = sld [smem:[#allocation0]]
  $region34: #{tpu_custom_call.1} parent=0
    _
  %s6 = ssub.s32 1, %s4
  %s7 = scalar_select 0, %s6, %s4
  $region1: #{tpu_custom_call.1} parent=0
    #allocation2 [shape = 'u8[4096]{0}', space=vmem, size = 0x1000, scoped, tag = 'input window, operand 0, single buffered']
    #allocation3 [shape = 's32[1]{0}', space=sflag, size = 0x4, scoped, tag = 'scoped memory for tpu_custom_call.1']
    #allocation4 [shape = 's32[1]{0}', space=sflag, size = 0x4, scoped, tag = 'scoped memory for tpu_custom_call.1']
    #allocation5 [shape = 'u8[8192]{0}', space=vmem, size = 0x2000, scoped, tag = 'input window, operand 1, single buffered']
    #allocation6 [shape = 's32[1]{0}', space=sflag, size = 0x4, scoped, tag = 'scoped memory for tpu_custom_call.1']
    #allocation7 [shape = 'u8[65536]{0}', space=vmem, size = 0x10000, scoped, tag = 'input window, operand 2, single buffered']
    #allocation8 [shape = 'u8[4096]{0}', space=vmem, size = 0x1000, scoped, tag = 'output window, operand 0, single buffered']
    %8 = vsyncpa [#allocation3], 0
    %9 = vsyncpa [#allocation6], 0
    %10 = vsyncpa [#allocation4], 0
    // Predicated region
    $region2: #{tpu_custom_call.1} parent=1 // pred_check
      _
    $region3: #{tpu_custom_call.1} parent=1 // pred_check_branch
      %12 = sbr.rel (0) target = $region5
    $region4: #{tpu_custom_call.1} parent=1 // pred_region
      %s14 = ssub.s32 128, 128
      %15 = vsyncadd [#allocation3], %s14
      %s17 = sshll.u32 [#allocation2], 4
      %s18 = int_to_ptr.vmem [resolvable:$true] %s17
      %20 = dma.hbm_to_vmem [thread:$0]  %s0, 128, %s18, [#allocation3]
    $region5: #{tpu_custom_call.1} parent=1 // pred_fallthru
      _
    // Predicated region
    $region6: #{tpu_custom_call.1} parent=1 // pred_check
      _
    $region7: #{tpu_custom_call.1} parent=1 // pred_check_branch
      %22 = sbr.rel (0) target = $region9
    $region8: #{tpu_custom_call.1} parent=1 // pred_region
      %s24 = ssub.s32 256, 256
      %25 = vsyncadd [#allocation6], %s24
      %s26 = sshll.u32 [#allocation5], 4
      %s27 = int_to_ptr.vmem [resolvable:$true] %s26
      %32 = dma.hbm_to_vmem [thread:$0]  %s1, 256, %s27, [#allocation6], 128, 128, 8
    $region9: #{tpu_custom_call.1} parent=1 // pred_fallthru
      _
    // Predicated region
    $region10: #{tpu_custom_call.1} parent=1 // pred_check
      _
    $region11: #{tpu_custom_call.1} parent=1 // pred_check_branch
      %34 = sbr.rel (0) target = $region13
    $region12: #{tpu_custom_call.1} parent=1 // pred_region
      %s36 = ssub.s32 2048, 2048
      %37 = vsyncadd [#allocation6], %s36
      %s38 = sshll.u32 [#allocation7], 4
      %s39 = int_to_ptr.vmem [resolvable:$true] %s38
      %44 = dma.hbm_to_vmem [thread:$0]  %s2, 2048, %s39, [#allocation6], 128, 128, 8
    $region13: #{tpu_custom_call.1} parent=1 // pred_fallthru
      _
    // Predicated region
    $region14: #{tpu_custom_call.1} parent=1 // pred_check
      _
    $region15: #{tpu_custom_call.1} parent=1 // pred_check_branch
      %46 = sbr.rel (0) target = $region17
    $region16: #{tpu_custom_call.1} parent=1 // pred_region
      %47 = dma.done [#allocation3], 128
    $region17: #{tpu_custom_call.1} parent=1 // pred_fallthru
      _
    // Predicated region
    $region18: #{tpu_custom_call.1} parent=1 // pred_check
      _
    $region19: #{tpu_custom_call.1} parent=1 // pred_check_branch
      %49 = sbr.rel (0) target = $region21
    $region20: #{tpu_custom_call.1} parent=1 // pred_region
      %50 = dma.done [#allocation6], 256
    $region21: #{tpu_custom_call.1} parent=1 // pred_fallthru
      _
    // Predicated region
    $region22: #{tpu_custom_call.1} parent=1 // pred_check
      _
    $region23: #{tpu_custom_call.1} parent=1 // pred_check_branch
      %52 = sbr.rel (0) target = $region25
    $region24: #{tpu_custom_call.1} parent=1 // pred_region
      %53 = dma.done [#allocation6], 2048
    $region25: #{tpu_custom_call.1} parent=1 // pred_fallthru
      _
    %v54 = vld [vmem:[#allocation2] sm:$0xff]
    %v55 = vld [vmem:[#allocation5] sm:$0xff]
    %v56 = vld [vmem:[#allocation5 + $0x8] sm:$0xff]
    %vm57 = vcmask 130048
    %v59 = vsel %vm57, %v54, 0
    %61 = vmatprep.subr.mxu0 0.0
    %62 = vmatpush1.msra.mxu0 %v55
    %63 = vmatprep.subr.mxu0 0.0
    %64 = vmatpush1.msra.mxu0 %v56
    %65 = vmatprep.subr.mxu0 0.0
    %66 = vmatpush1.msra.mxu0 0.0
    %67 = vmatprep.subr.mxu0 0.0
    %68 = vmatpush1.msra.mxu0 0.0
    %69 = vmatprep.subr.mxu0 0.0
    %70 = vmatpush1.msra.mxu0 0.0
    %71 = vmatprep.subr.mxu0 0.0
    %72 = vmatpush1.msra.mxu0 0.0
    %73 = vmatprep.subr.mxu0 0.0
    %74 = vmatpush1.msra.mxu0 0.0
    %75 = vmatprep.subr.mxu0 0.0
    %76 = vmatpush1.msra.mxu0 0.0
    %77 = vmatprep.subr.mxu0 0.0
    %78 = vmatpush1.msra.mxu0 0.0
    %79 = vmatprep.subr.mxu0 0.0
    %80 = vmatpush1.msra.mxu0 0.0
    %81 = vmatprep.subr.mxu0 0.0
    %82 = vmatpush1.msra.mxu0 0.0
    %83 = vmatprep.subr.mxu0 0.0
    %84 = vmatpush1.msra.mxu0 0.0
    %85 = vmatprep.subr.mxu0 0.0
    %86 = vmatpush1.msra.mxu0 0.0
    %87 = vmatprep.subr.mxu0 0.0
    %88 = vmatpush1.msra.mxu0 0.0
    %89 = vmatprep.subr.mxu0 0.0
    %90 = vmatpush1.msra.mxu0 0.0
    %91 = vmatprep.subr.mxu0 0.0
    %92 = vmatpush1.msra.mxu0 0.0
    %93 = vmatprep.subr.mxu0 0.0
    %94 = vmatpush1.msra.mxu0 0.0
    %95 = vmatprep.subr.mxu0 0.0
    %96 = vmatpush1.msra.mxu0 0.0
    %97 = vmatprep.subr.mxu0 0.0
    %98 = vmatpush1.msra.mxu0 0.0
    %99 = vmatprep.subr.mxu0 0.0
    %100 = vmatpush1.msra.mxu0 0.0
    %101 = vmatprep.subr.mxu0 0.0
    %102 = vmatpush1.msra.mxu0 0.0
    %103 = vmatprep.subr.mxu0 0.0
    %104 = vmatpush1.msra.mxu0 0.0
    %105 = vmatprep.subr.mxu0 0.0
    %106 = vmatpush1.msra.mxu0 0.0
    %107 = vmatprep.subr.mxu0 0.0
    %108 = vmatpush1.msra.mxu0 0.0
    %109 = vmatprep.subr.mxu0 0.0
    %110 = vmatpush1.msra.mxu0 0.0
    %111 = vmatprep.subr.mxu0 0.0
    %112 = vmatpush1.msra.mxu0 0.0
    %113 = vmatprep.subr.mxu0 0.0
    %114 = vmatpush1.msra.mxu0 0.0
    %115 = vmatprep.subr.mxu0 0.0
    %116 = vmatpush1.msra.mxu0 0.0
    %117 = vmatprep.subr.mxu0 0.0
    %118 = vmatpush1.msra.mxu0 0.0
    %119 = vmatprep.subr.mxu0 0.0
    %120 = vmatpush1.msra.mxu0 0.0
    %121 = vmatprep.subr.mxu0 0.0
    %122 = vmatpush1.msra.mxu0 0.0
    %123 = vmatprep.subr.mxu0 0.0
    %124 = vmatpush1.msra.mxu0 0.0
    %125 = vmatprep.mubr.f32.mxu0 0.0
    %126 = vmatmul.mubr.f32.gmra.mrb[0].mxu0 %v59
    %v127 = vpop.f32.mrb[0].mxu0
    %v128 = vadd.f32 0.0, %v127
    %v129 = vpop.f32.mrb[0].mxu0
    %130 = vdwg.mxu0
    %v131 = vld [vmem:[#allocation7] sm:$0xff]
    %v132 = vld [vmem:[#allocation7 + $0x8] sm:$0xff]
    %v133 = vld [vmem:[#allocation7 + $0x10] sm:$0xff]
    %v134 = vld [vmem:[#allocation7 + $0x18] sm:$0xff]
    %v135 = vld [vmem:[#allocation7 + $0x20] sm:$0xff]
    %v136 = vld [vmem:[#allocation7 + $0x28] sm:$0xff]
    %v137 = vld [vmem:[#allocation7 + $0x30] sm:$0xff]
    %v138 = vld [vmem:[#allocation7 + $0x38] sm:$0xff]
    %v139 = vld [vmem:[#allocation7 + $0x40] sm:$0xff]
    %v140 = vld [vmem:[#allocation7 + $0x48] sm:$0xff]
    %v141 = vld [vmem:[#allocation7 + $0x50] sm:$0xff]
    %v142 = vld [vmem:[#allocation7 + $0x58] sm:$0xff]
    %v143 = vld [vmem:[#allocation7 + $0x60] sm:$0xff]
    %v144 = vld [vmem:[#allocation7 + $0x68] sm:$0xff]
    %v145 = vld [vmem:[#allocation7 + $0x70] sm:$0xff]
    %v146 = vld [vmem:[#allocation7 + $0x78] sm:$0xff]
    %147 = vmatprep.subr.mxu0 0.0
    %148 = vmatpush1.msra.mxu0 %v131
    %149 = vmatprep.subr.mxu0 0.0
    %150 = vmatpush1.msra.mxu0 %v132
    %151 = vmatprep.subr.mxu0 0.0
    %152 = vmatpush1.msra.mxu0 %v133
    %153 = vmatprep.subr.mxu0 0.0
    %154 = vmatpush1.msra.mxu0 %v134
    %155 = vmatprep.subr.mxu0 0.0
    %156 = vmatpush1.msra.mxu0 %v135
    %157 = vmatprep.subr.mxu0 0.0
    %158 = vmatpush1.msra.mxu0 %v136
    %159 = vmatprep.subr.mxu0 0.0
    %160 = vmatpush1.msra.mxu0 %v137
    %161 = vmatprep.subr.mxu0 0.0
    %162 = vmatpush1.msra.mxu0 %v138
    %163 = vmatprep.subr.mxu0 0.0
    %164 = vmatpush1.msra.mxu0 %v139
    %165 = vmatprep.subr.mxu0 0.0
    %166 = vmatpush1.msra.mxu0 %v140
    %167 = vmatprep.subr.mxu0 0.0
    %168 = vmatpush1.msra.mxu0 %v141
    %169 = vmatprep.subr.mxu0 0.0
    %170 = vmatpush1.msra.mxu0 %v142
    %171 = vmatprep.subr.mxu0 0.0
    %172 = vmatpush1.msra.mxu0 %v143
    %173 = vmatprep.subr.mxu0 0.0
    %174 = vmatpush1.msra.mxu0 %v144
    %175 = vmatprep.subr.mxu0 0.0
    %176 = vmatpush1.msra.mxu0 %v145
    %177 = vmatprep.subr.mxu0 0.0
    %178 = vmatpush1.msra.mxu0 %v146
    %179 = vmatprep.subr.mxu0 0.0
    %180 = vmatpush1.msra.mxu0 0.0
    %181 = vmatprep.subr.mxu0 0.0
    %182 = vmatpush1.msra.mxu0 0.0
    %183 = vmatprep.subr.mxu0 0.0
    %184 = vmatpush1.msra.mxu0 0.0
    %185 = vmatprep.subr.mxu0 0.0
    %186 = vmatpush1.msra.mxu0 0.0
    %187 = vmatprep.subr.mxu0 0.0
    %188 = vmatpush1.msra.mxu0 0.0
    %189 = vmatprep.subr.mxu0 0.0
    %190 = vmatpush1.msra.mxu0 0.0
    %191 = vmatprep.subr.mxu0 0.0
    %192 = vmatpush1.msra.mxu0 0.0
    %193 = vmatprep.subr.mxu0 0.0
    %194 = vmatpush1.msra.mxu0 0.0
    %195 = vmatprep.subr.mxu0 0.0
    %196 = vmatpush1.msra.mxu0 0.0
    %197 = vmatprep.subr.mxu0 0.0
    %198 = vmatpush1.msra.mxu0 0.0
    %199 = vmatprep.subr.mxu0 0.0
    %200 = vmatpush1.msra.mxu0 0.0
    %201 = vmatprep.subr.mxu0 0.0
    %202 = vmatpush1.msra.mxu0 0.0
    %203 = vmatprep.subr.mxu0 0.0
    %204 = vmatpush1.msra.mxu0 0.0
    %205 = vmatprep.subr.mxu0 0.0
    %206 = vmatpush1.msra.mxu0 0.0
    %207 = vmatprep.subr.mxu0 0.0
    %208 = vmatpush1.msra.mxu0 0.0
    %209 = vmatprep.subr.mxu0 0.0
    %210 = vmatpush1.msra.mxu0 0.0
    %211 = vmatprep.mubr.f32.mxu0 0.0
    %212 = vmatmul.mubr.f32.gmra.mrb[0].mxu0 %v128
    %v213 = vpop.f32.mrb[0].mxu0
    %v214 = vadd.f32 0.0, %v213
    %v215 = vpop.f32.mrb[0].mxu0
    %216 = vdwg.mxu0
    %217 = vst [vmem:[#allocation8] sm:$0xff] %v214
    // Predicated region
    $region26: #{tpu_custom_call.1} parent=1 // pred_check
      _
    $region27: #{tpu_custom_call.1} parent=1 // pred_check_branch
      %219 = sbr.rel (0) target = $region29
    $region28: #{tpu_custom_call.1} parent=1 // pred_region
      %s221 = ssub.s32 128, 128
      %222 = vsyncadd [#allocation4], %s221
      %s224 = sshll.u32 [#allocation8], 4
      %s225 = int_to_ptr.vmem [resolvable:$true] %s224
      %227 = dma.vmem_to_hbm [thread:$0]  %s225, 128, %s3, [#allocation4]
    $region29: #{tpu_custom_call.1} parent=1 // pred_fallthru
      _
    // Predicated region
    $region30: #{tpu_custom_call.1} parent=1 // pred_check
      _
    $region31: #{tpu_custom_call.1} parent=1 // pred_check_branch
      %229 = sbr.rel (0) target = $region33
    $region32: #{tpu_custom_call.1} parent=1 // pred_region
      %230 = dma.done [#allocation4], 128
    $region33: #{tpu_custom_call.1} parent=1 // pred_fallthru
      _
    %231 = vsyncpa [#allocation3], 1
    %232 = vsyncpa [#allocation6], 1
    %233 = vsyncpa [#allocation4], 1

// kernel: tpu_custom_call.1
$region0: #{tpu_custom_call.1}
  #allocation0 [shape = 'u32[]', space=smem, size = 0x4, offset = 0x4, fixed_abs, tag = 'smem constant byte address 0x4 - core index']
  #allocation1 [shape = 'u32[144,128]{1,0:T(1,128)}', space=vmem, size = 0x12000, scoped, tag = 'internal scratch']
  %s0 = inlined_call_operand.hbm [shape: f32[8,16], index: 0, kind: input, shape index: {}]
  %s1 = inlined_call_operand.hbm [shape: f32[16,128], index: 1, kind: input, shape index: {}]
  %s2 = inlined_call_operand.hbm [shape: f32[128,128], index: 2, kind: input, shape index: {}]
  %s3 = inlined_call_operand.hbm [shape: f32[8,128], index: 3, kind: output, shape index: {}]
  %s4 = sld [smem:[#allocation0]]
  $region34: #{tpu_custom_call.1} parent=0
    _
  %s6 = ssub.s32 1, %s4
  %s7 = scalar_select 0, %s6, %s4
  $region1: #{tpu_custom_call.1} parent=0
    #allocation2 [shape = 'u8[4096]{0}', space=vmem, size = 0x1000, scoped, tag = 'input window, operand 0, single buffered']
    #allocation3 [shape = 's32[1]{0}', space=sflag, size = 0x4, scoped, tag = 'scoped memory for tpu_custom_call.1']
    #allocation4 [shape = 's32[1]{0}', space=sflag, size = 0x4, scoped, tag = 'scoped memory for tpu_custom_call.1']
    #allocation5 [shape = 'u8[8192]{0}', space=vmem, size = 0x2000, scoped, tag = 'input window, operand 1, single buffered']
    #allocation6 [shape = 's32[1]{0}', space=sflag, size = 0x4, scoped, tag = 'scoped memory for tpu_custom_call.1']
    #allocation7 [shape = 'u8[65536]{0}', space=vmem, size = 0x10000, scoped, tag = 'input window, operand 2, single buffered']
    #allocation8 [shape = 'u8[4096]{0}', space=vmem, size = 0x1000, scoped, tag = 'output window, operand 0, single buffered']
    %8 = vsyncpa [#allocation3], 0
    %9 = vsyncpa [#allocation6], 0
    %10 = vsyncpa [#allocation4], 0
    // Predicated region
    $region2: #{tpu_custom_call.1} parent=1 // pred_check
      _
    $region3: #{tpu_custom_call.1} parent=1 // pred_check_branch
      %12 = sbr.rel (0) target = $region5
    $region4: #{tpu_custom_call.1} parent=1 // pred_region
      %s14 = ssub.s32 128, 128
      %15 = vsyncadd [#allocation3], %s14
      %s17 = sshll.u32 [#allocation2], 4
      %s18 = int_to_ptr.vmem [resolvable:$true] %s17
      %20 = dma.hbm_to_vmem [thread:$0]  %s0, 128, %s18, [#allocation3]
    $region5: #{tpu_custom_call.1} parent=1 // pred_fallthru
      _
    // Predicated region
    $region6: #{tpu_custom_call.1} parent=1 // pred_check
      _
    $region7: #{tpu_custom_call.1} parent=1 // pred_check_branch
      %22 = sbr.rel (0) target = $region9
    $region8: #{tpu_custom_call.1} parent=1 // pred_region
      %s24 = ssub.s32 256, 256
      %25 = vsyncadd [#allocation6], %s24
      %s26 = sshll.u32 [#allocation5], 4
      %s27 = int_to_ptr.vmem [resolvable:$true] %s26
      %32 = dma.hbm_to_vmem [thread:$0]  %s1, 256, %s27, [#allocation6], 128, 128, 8
    $region9: #{tpu_custom_call.1} parent=1 // pred_fallthru
      _
    // Predicated region
    $region10: #{tpu_custom_call.1} parent=1 // pred_check
      _
    $region11: #{tpu_custom_call.1} parent=1 // pred_check_branch
      %34 = sbr.rel (0) target = $region13
    $region12: #{tpu_custom_call.1} parent=1 // pred_region
      %s36 = ssub.s32 2048, 2048
      %37 = vsyncadd [#allocation6], %s36
      %s38 = sshll.u32 [#allocation7], 4
      %s39 = int_to_ptr.vmem [resolvable:$true] %s38
      %44 = dma.hbm_to_vmem [thread:$0]  %s2, 2048, %s39, [#allocation6], 128, 128, 8
    $region13: #{tpu_custom_call.1} parent=1 // pred_fallthru
      _
    // Predicated region
    $region14: #{tpu_custom_call.1} parent=1 // pred_check
      _
    $region15: #{tpu_custom_call.1} parent=1 // pred_check_branch
      %46 = sbr.rel (0) target = $region17
    $region16: #{tpu_custom_call.1} parent=1 // pred_region
      %47 = dma.done [#allocation3], 128
    $region17: #{tpu_custom_call.1} parent=1 // pred_fallthru
      _
    // Predicated region
    $region18: #{tpu_custom_call.1} parent=1 // pred_check
      _
    $region19: #{tpu_custom_call.1} parent=1 // pred_check_branch
      %49 = sbr.rel (0) target = $region21
    $region20: #{tpu_custom_call.1} parent=1 // pred_region
      %50 = dma.done [#allocation6], 256
    $region21: #{tpu_custom_call.1} parent=1 // pred_fallthru
      _
    // Predicated region
    $region22: #{tpu_custom_call.1} parent=1 // pred_check
      _
    $region23: #{tpu_custom_call.1} parent=1 // pred_check_branch
      %52 = sbr.rel (0) target = $region25
    $region24: #{tpu_custom_call.1} parent=1 // pred_region
      %53 = dma.done [#allocation6], 2048
    $region25: #{tpu_custom_call.1} parent=1 // pred_fallthru
      _
    %v54 = vld [vmem:[#allocation2] sm:$0xff]
    %v55 = vld [vmem:[#allocation5] sm:$0xff]
    %v56 = vld [vmem:[#allocation5 + $0x8] sm:$0xff]
    %vm57 = vcmask 130048
    %v59 = vsel %vm57, %v54, 0
    %61 = vmatprep.subr.mxu0 0.0
    %62 = vmatpush1.msra.mxu0 %v55
    %63 = vmatprep.subr.mxu0 0.0
    %64 = vmatpush1.msra.mxu0 %v56
    %65 = vmatprep.subr.mxu0 0.0
    %66 = vmatpush1.msra.mxu0 0.0
    %67 = vmatprep.subr.mxu0 0.0
    %68 = vmatpush1.msra.mxu0 0.0
    %69 = vmatprep.subr.mxu0 0.0
    %70 = vmatpush1.msra.mxu0 0.0
    %71 = vmatprep.subr.mxu0 0.0
    %72 = vmatpush1.msra.mxu0 0.0
    %73 = vmatprep.subr.mxu0 0.0
    %74 = vmatpush1.msra.mxu0 0.0
    %75 = vmatprep.subr.mxu0 0.0
    %76 = vmatpush1.msra.mxu0 0.0
    %77 = vmatprep.subr.mxu0 0.0
    %78 = vmatpush1.msra.mxu0 0.0
    %79 = vmatprep.subr.mxu0 0.0
    %80 = vmatpush1.msra.mxu0 0.0
    %81 = vmatprep.subr.mxu0 0.0
    %82 = vmatpush1.msra.mxu0 0.0
    %83 = vmatprep.subr.mxu0 0.0
    %84 = vmatpush1.msra.mxu0 0.0
    %85 = vmatprep.subr.mxu0 0.0
    %86 = vmatpush1.msra.mxu0 0.0
    %87 = vmatprep.subr.mxu0 0.0
    %88 = vmatpush1.msra.mxu0 0.0
    %89 = vmatprep.subr.mxu0 0.0
    %90 = vmatpush1.msra.mxu0 0.0
    %91 = vmatprep.subr.mxu0 0.0
    %92 = vmatpush1.msra.mxu0 0.0
    %93 = vmatprep.subr.mxu0 0.0
    %94 = vmatpush1.msra.mxu0 0.0
    %95 = vmatprep.subr.mxu0 0.0
    %96 = vmatpush1.msra.mxu0 0.0
    %97 = vmatprep.subr.mxu0 0.0
    %98 = vmatpush1.msra.mxu0 0.0
    %99 = vmatprep.subr.mxu0 0.0
    %100 = vmatpush1.msra.mxu0 0.0
    %101 = vmatprep.subr.mxu0 0.0
    %102 = vmatpush1.msra.mxu0 0.0
    %103 = vmatprep.subr.mxu0 0.0
    %104 = vmatpush1.msra.mxu0 0.0
    %105 = vmatprep.subr.mxu0 0.0
    %106 = vmatpush1.msra.mxu0 0.0
    %107 = vmatprep.subr.mxu0 0.0
    %108 = vmatpush1.msra.mxu0 0.0
    %109 = vmatprep.subr.mxu0 0.0
    %110 = vmatpush1.msra.mxu0 0.0
    %111 = vmatprep.subr.mxu0 0.0
    %112 = vmatpush1.msra.mxu0 0.0
    %113 = vmatprep.subr.mxu0 0.0
    %114 = vmatpush1.msra.mxu0 0.0
    %115 = vmatprep.subr.mxu0 0.0
    %116 = vmatpush1.msra.mxu0 0.0
    %117 = vmatprep.subr.mxu0 0.0
    %118 = vmatpush1.msra.mxu0 0.0
    %119 = vmatprep.subr.mxu0 0.0
    %120 = vmatpush1.msra.mxu0 0.0
    %121 = vmatprep.subr.mxu0 0.0
    %122 = vmatpush1.msra.mxu0 0.0
    %123 = vmatprep.subr.mxu0 0.0
    %124 = vmatpush1.msra.mxu0 0.0
    %125 = vmatprep.mubr.f32.mxu0 0.0
    %126 = vmatmul.mubr.f32.gmra.mrb[0].mxu0 %v59
    %v127 = vpop.f32.mrb[0].mxu0
    %v128 = vadd.f32 0.0, %v127
    %v129 = vpop.f32.mrb[0].mxu0
    %130 = vdwg.mxu0
    %v131 = vld [vmem:[#allocation7] sm:$0xff]
    %v132 = vld [vmem:[#allocation7 + $0x8] sm:$0xff]
    %v133 = vld [vmem:[#allocation7 + $0x10] sm:$0xff]
    %v134 = vld [vmem:[#allocation7 + $0x18] sm:$0xff]
    %v135 = vld [vmem:[#allocation7 + $0x20] sm:$0xff]
    %v136 = vld [vmem:[#allocation7 + $0x28] sm:$0xff]
    %v137 = vld [vmem:[#allocation7 + $0x30] sm:$0xff]
    %v138 = vld [vmem:[#allocation7 + $0x38] sm:$0xff]
    %v139 = vld [vmem:[#allocation7 + $0x40] sm:$0xff]
    %v140 = vld [vmem:[#allocation7 + $0x48] sm:$0xff]
    %v141 = vld [vmem:[#allocation7 + $0x50] sm:$0xff]
    %v142 = vld [vmem:[#allocation7 + $0x58] sm:$0xff]
    %v143 = vld [vmem:[#allocation7 + $0x60] sm:$0xff]
    %v144 = vld [vmem:[#allocation7 + $0x68] sm:$0xff]
    %v145 = vld [vmem:[#allocation7 + $0x70] sm:$0xff]
    %v146 = vld [vmem:[#allocation7 + $0x78] sm:$0xff]
    %147 = vmatprep.subr.mxu0 0.0
    %148 = vmatpush1.msra.mxu0 %v131
    %149 = vmatprep.subr.mxu0 0.0
    %150 = vmatpush1.msra.mxu0 %v132
    %151 = vmatprep.subr.mxu0 0.0
    %152 = vmatpush1.msra.mxu0 %v133
    %153 = vmatprep.subr.mxu0 0.0
    %154 = vmatpush1.msra.mxu0 %v134
    %155 = vmatprep.subr.mxu0 0.0
    %156 = vmatpush1.msra.mxu0 %v135
    %157 = vmatprep.subr.mxu0 0.0
    %158 = vmatpush1.msra.mxu0 %v136
    %159 = vmatprep.subr.mxu0 0.0
    %160 = vmatpush1.msra.mxu0 %v137
    %161 = vmatprep.subr.mxu0 0.0
    %162 = vmatpush1.msra.mxu0 %v138
    %163 = vmatprep.subr.mxu0 0.0
    %164 = vmatpush1.msra.mxu0 %v139
    %165 = vmatprep.subr.mxu0 0.0
    %166 = vmatpush1.msra.mxu0 %v140
    %167 = vmatprep.subr.mxu0 0.0
    %168 = vmatpush1.msra.mxu0 %v141
    %169 = vmatprep.subr.mxu0 0.0
    %170 = vmatpush1.msra.mxu0 %v142
    %171 = vmatprep.subr.mxu0 0.0
    %172 = vmatpush1.msra.mxu0 %v143
    %173 = vmatprep.subr.mxu0 0.0
    %174 = vmatpush1.msra.mxu0 %v144
    %175 = vmatprep.subr.mxu0 0.0
    %176 = vmatpush1.msra.mxu0 %v145
    %177 = vmatprep.subr.mxu0 0.0
    %178 = vmatpush1.msra.mxu0 %v146
    %179 = vmatprep.subr.mxu0 0.0
    %180 = vmatpush1.msra.mxu0 0.0
    %181 = vmatprep.subr.mxu0 0.0
    %182 = vmatpush1.msra.mxu0 0.0
    %183 = vmatprep.subr.mxu0 0.0
    %184 = vmatpush1.msra.mxu0 0.0
    %185 = vmatprep.subr.mxu0 0.0
    %186 = vmatpush1.msra.mxu0 0.0
    %187 = vmatprep.subr.mxu0 0.0
    %188 = vmatpush1.msra.mxu0 0.0
    %189 = vmatprep.subr.mxu0 0.0
    %190 = vmatpush1.msra.mxu0 0.0
    %191 = vmatprep.subr.mxu0 0.0
    %192 = vmatpush1.msra.mxu0 0.0
    %193 = vmatprep.subr.mxu0 0.0
    %194 = vmatpush1.msra.mxu0 0.0
    %195 = vmatprep.subr.mxu0 0.0
    %196 = vmatpush1.msra.mxu0 0.0
    %197 = vmatprep.subr.mxu0 0.0
    %198 = vmatpush1.msra.mxu0 0.0
    %199 = vmatprep.subr.mxu0 0.0
    %200 = vmatpush1.msra.mxu0 0.0
    %201 = vmatprep.subr.mxu0 0.0
    %202 = vmatpush1.msra.mxu0 0.0
    %203 = vmatprep.subr.mxu0 0.0
    %204 = vmatpush1.msra.mxu0 0.0
    %205 = vmatprep.subr.mxu0 0.0
    %206 = vmatpush1.msra.mxu0 0.0
    %207 = vmatprep.subr.mxu0 0.0
    %208 = vmatpush1.msra.mxu0 0.0
    %209 = vmatprep.subr.mxu0 0.0
    %210 = vmatpush1.msra.mxu0 0.0
    %211 = vmatprep.mubr.f32.mxu0 0.0
    %212 = vmatmul.mubr.f32.gmra.mrb[0].mxu0 %v128
    %v213 = vpop.f32.mrb[0].mxu0
    %v214 = vadd.f32 0.0, %v213
    %v215 = vpop.f32.mrb[0].mxu0
    %216 = vdwg.mxu0
    %217 = vst [vmem:[#allocation8] sm:$0xff] %v214
    // Predicated region
    $region26: #{tpu_custom_call.1} parent=1 // pred_check
      _
    $region27: #{tpu_custom_call.1} parent=1 // pred_check_branch
      %219 = sbr.rel (0) target = $region29
    $region28: #{tpu_custom_call.1} parent=1 // pred_region
      %s221 = ssub.s32 128, 128
      %222 = vsyncadd [#allocation4], %s221
      %s224 = sshll.u32 [#allocation8], 4
      %s225 = int_to_ptr.vmem [resolvable:$true] %s224
      %227 = dma.vmem_to_hbm [thread:$0]  %s225, 128, %s3, [#allocation4]
    $region29: #{tpu_custom_call.1} parent=1 // pred_fallthru
      _
    // Predicated region
    $region30: #{tpu_custom_call.1} parent=1 // pred_check
      _
    $region31: #{tpu_custom_call.1} parent=1 // pred_check_branch
      %229 = sbr.rel (0) target = $region33
    $region32: #{tpu_custom_call.1} parent=1 // pred_region
      %230 = dma.done [#allocation4], 128
    $region33: #{tpu_custom_call.1} parent=1 // pred_fallthru
      _
    %231 = vsyncpa [#allocation3], 1
    %232 = vsyncpa [#allocation6], 1
    %233 = vsyncpa [#allocation4], 1

</llo_original>
